<compile_context>
chip_gen: v7x
topology: tpu7x:2x2x1
jax: 0.10.0
libtpu: 0.0.40
codegen_flags: <defaults>
</compile_context>

<pallas_src>
import functools

import jax
import jax.numpy as jnp
from jax import lax
from jax.experimental import pallas as pl
from jax.experimental.pallas import tpu as pltpu

_LANES = 128        # lane width of every mask tile (last dim)
_SUB = 8            # one f32 (8,128) vreg worth of rows
_TR_MAX = 2048      # rows per streamed tile: 1 MiB per f32 block, double-buffered x2 inputs = 4 MiB
_PAD_LOGIT = -1e4   # sigmoid(-1e4)==0 and BCE(-1e4, 0)==0 -> padded / masked elems contribute 0


def _bce_terms(x, t):
    """Stable BCE-with-logits fused with the sigmoid already needed for Dice.

    max(x,0) - x*t - log(max(p,1-p)) == max(x,0) - x*t + log1p(exp(-|x|)) but reuses the
    sigmoid (2 EUP transcendentals per element instead of 3)."""
    p = jax.nn.sigmoid(x)
    bce = jnp.maximum(x, 0.0) - x * t - jnp.log(jnp.maximum(p, 1.0 - p))
    return bce, p * t, p + t


def _mixed_loss_kernel(mask_logit_ref, mask_tgt_ref, cls_logit_ref, cls_tgt_ref,
                       part_ref, bce_acc, inter_acc, den_acc,
                       *, tr, rows, nts, needs_mask, unroll):
    s = pl.program_id(0)            # outer parallel split of the tile axis (v7x, B == 1)
    b = pl.program_id(1)            # sample
    t = pl.program_id(2)            # streamed row tile within this (s, b)
    last_t = pl.num_programs(2) - 1

    # ---- new (s, b) pair: clear the tiny (8,128) accumulators ---------------------------
    @pl.when(t == 0)
    def _():
        bce_acc[...] = jnp.zeros_like(bce_acc)
        inter_acc[...] = jnp.zeros_like(inter_acc)
        den_acc[...] = jnp.zeros_like(den_acc)

    full_chunks = tr // _SUB
    rem = tr - full_chunks * _SUB

    def accumulate(masked, rows_left):
        # Stream the (tr,128) tile in (8,128) chunks; running sums live in the fori_loop
        # carry (vregs), so the hot loop is loads + VPU/EUP math only.
        def contrib(x, tg, row0, nrows):
            x = x.astype(jnp.float32)
            tg = tg.astype(jnp.float32)
            if masked:
                ridx = lax.broadcasted_iota(jnp.int32, (nrows, _LANES), 0) + row0
                ok = ridx < rows_left
                x = jnp.where(ok, x, _PAD_LOGIT)   # masked elements contribute exactly 0
                tg = jnp.where(ok, tg, 0.0)
            return _bce_terms(x, tg)

        if full_chunks > 0:
            zero = jnp.zeros((_SUB, _LANES), jnp.float32)

            def body(c, carry):
                a_bce, a_int, a_den = carry
                r0 = pl.multiple_of(c * _SUB, _SUB)
                x = mask_logit_ref[0, pl.ds(r0, _SUB), :]
                tg = mask_tgt_ref[0, pl.ds(r0, _SUB), :]
                d_bce, d_int, d_den = contrib(x, tg, c * _SUB, _SUB)
                return a_bce + d_bce, a_int + d_int, a_den + d_den

            c_bce, c_int, c_den = lax.fori_loop(0, full_chunks, body,
                                                (zero, zero, zero), unroll=unroll)
            bce_acc[...] += c_bce
            inter_acc[...] += c_int
            den_acc[...] += c_den

        if rem:  # ragged (<8 row) tail; only occurs for tiny single-tile samples
            x = mask_logit_ref[0, full_chunks * _SUB:tr, :]
            tg = mask_tgt_ref[0, full_chunks * _SUB:tr, :]
            d_bce, d_int, d_den = contrib(x, tg, full_chunks * _SUB, rem)
            bce_acc[:rem, :] += d_bce
            inter_acc[:rem, :] += d_int
            den_acc[:rem, :] += d_den

    if needs_mask:
        gt = s * nts + t                  # global row-tile index of this program
        rows_left = rows - gt * tr        # rows of real data in this tile (<=0 for dead tiles)
        is_partial = (gt + 1) * tr > rows

        @pl.when(jnp.logical_not(is_partial))
        def _():
            accumulate(False, None)

        @pl.when(is_partial)
        def _():
            accumulate(True, rows_left)
    else:
        accumulate(False, None)

    # ---- end of this (s, b): one cross-lane reduce, lane-dense raw-sum write ------------
    def finalize(with_cls):
        bce_sum = jnp.sum(bce_acc[...])
        inter = jnp.sum(inter_acc[...])
        den = jnp.sum(den_acc[...])
        lane = lax.broadcasted_iota(jnp.int32, part_ref.shape, 3)
        vec = jnp.where(lane == 0, bce_sum, 0.0)
        vec = jnp.where(lane == 1, inter, vec)
        vec = jnp.where(lane == 2, den, vec)
        if with_cls:
            # classification branch: tiny, computed exactly once (only by the (0,0) program).
            cx = cls_logit_ref[...].astype(jnp.float32)
            ct = cls_tgt_ref[...].astype(jnp.float32)
            cls_bce, _, _ = _bce_terms(cx, ct)
            vec = jnp.where(lane == 3, jnp.sum(cls_bce), vec)
        part_ref[...] = vec

    is_owner = (s == 0) & (b == 0)

    @pl.when((t == last_t) & jnp.logical_not(is_owner))
    def _():
        finalize(False)

    @pl.when((t == last_t) & is_owner)
    def _():
        finalize(True)


def mixed_loss(mask_out, mask_target, cls_out, cls_target):
    """Pallas implementation of MixedLoss.forward. Returns (dice_loss, cls_loss) f32 scalars."""
    B = int(mask_out.shape[0])
    N = 1
    for d in mask_out.shape[1:]:
        N *= int(d)

    # ---- layout plumbing: (B,C,H,W) -> (B,R,128).  Copy-free unless N % 128 != 0. -------
    R = -(-N // _LANES)
    lane_pad = R * _LANES - N
    mask_logit = mask_out.reshape(B, N)
    mask_tgt = mask_target.reshape(B, N)
    if lane_pad:
        # TODO(synk): only hit when C*H*W is not 128-aligned; this rare path still copies the
        # mask tensors once.  Row/tile alignment is handled in-kernel, so the common case is pad-free.
        mask_logit = jnp.pad(mask_logit, ((0, 0), (0, lane_pad)), constant_values=_PAD_LOGIT)
        mask_tgt = jnp.pad(mask_tgt, ((0, 0), (0, lane_pad)), constant_values=0)
    mask_logit = mask_logit.reshape(B, R, _LANES)
    mask_tgt = mask_tgt.reshape(B, R, _LANES)

    # Fixed large row tile (no R % TR requirement); partial / dead tiles are masked in-kernel.
    # TR == R (a full-extent block dim) for small samples avoids any (8,128) alignment issue.
    TR = R if R <= _TR_MAX else _TR_MAX
    NT = -(-R // TR)
    # v7x dual-TensorCore occupancy: with a single sample, split the streamed tile axis in two.
    S = 2 if (B == 1 and NT >= 2) else 1
    NTS = -(-NT // S)
    needs_mask = (NT * TR != R) or (S * NTS != NT)
    unroll = max(1, min(8, TR // _SUB))

    kernel = functools.partial(_mixed_loss_kernel, tr=TR, rows=R, nts=NTS,
                               needs_mask=needs_mask, unroll=unroll)

    cls_shape = tuple(int(d) for d in cls_out.shape)

    def mask_map(s, b, t):
        # Clamp dead tiles (from the S-split) onto the last real tile; they are masked to 0.
        return (b, jnp.minimum(s * NTS + t, NT - 1), 0)

    part = pl.pallas_call(
        kernel,
        out_shape=jax.ShapeDtypeStruct((S, B, 1, _LANES), jnp.float32),
        grid_spec=pltpu.PrefetchScalarGridSpec(
            num_scalar_prefetch=0,
            grid=(S, B, NTS),
            in_specs=[
                pl.BlockSpec((1, TR, _LANES), mask_map),                      # mask logits
                pl.BlockSpec((1, TR, _LANES), mask_map),                      # mask targets
                pl.BlockSpec(cls_shape, lambda s, b, t: (0,) * len(cls_shape)),  # cls logits
                pl.BlockSpec(cls_shape, lambda s, b, t: (0,) * len(cls_shape)),  # cls targets
            ],
            out_specs=pl.BlockSpec((1, 1, 1, _LANES), lambda s, b, t: (s, b, 0, 0)),
            scratch_shapes=[pltpu.VMEM((_SUB, _LANES), jnp.float32)] * 3,
        ),
        compiler_params=pltpu.CompilerParams(
            dimension_semantics=("parallel", "parallel", "arbitrary"),
            vmem_limit_bytes=32 * 1024 * 1024,
        ),
    )(mask_logit, mask_tgt, cls_out, cls_target)

    # Tiny combine of the per-(split, sample) raw sums; kept in the wrapper so the parallel
    # axes can be sharded across TensorCores and every kernel store stays lane-dense.
    bce_total = jnp.sum(part[:, :, 0, 0])
    inter_b = jnp.sum(part[:, :, 0, 1], axis=0)          # (B,)
    den_b = jnp.sum(part[:, :, 0, 2], axis=0)            # (B,)
    score_b = (2.0 * inter_b + 1.0) / (den_b + 1.0)
    cls_sum = part[0, 0, 0, 3]

    cls_elems = 1
    for d in cls_shape:
        cls_elems *= d

    dice_loss = bce_total / float(B * N) + (1.0 - jnp.mean(score_b))
    cls_loss = cls_sum / float(cls_elems)
    return dice_loss, cls_loss


def _reference(mask_out, mask_target, cls_out, cls_target):
    B = mask_out.shape[0]
    x = mask_out.reshape(B, -1).astype(jnp.float32)
    t = mask_target.reshape(B, -1).astype(jnp.float32)
    bce_el = jnp.maximum(x, 0.0) - x * t + jnp.log1p(jnp.exp(-jnp.abs(x)))
    bce = jnp.mean(bce_el)
    p = jax.nn.sigmoid(x)
    score = (2.0 * jnp.sum(p * t, 1) + 1.0) / (jnp.sum(p, 1) + jnp.sum(t, 1) + 1.0)
    dice = 1.0 - jnp.mean(score)
    cx = cls_out.astype(jnp.float32)
    ct = cls_target.astype(jnp.float32)
    cls_el = jnp.maximum(cx, 0.0) - cx * ct + jnp.log1p(jnp.exp(-jnp.abs(cx)))
    return bce + dice, jnp.mean(cls_el)


if __name__ == "__main__":
    key = jax.random.PRNGKey(0)
    keys = jax.random.split(key, 20)

    def make_case(k0, k1, k2, k3, mask_shape, n_cls, dtype):
        m = jax.random.normal(k0, mask_shape, dtype=jnp.float32).astype(dtype)
        t = (jax.random.uniform(k1, mask_shape) > 0.5).astype(dtype)
        c = jax.random.normal(k2, (mask_shape[0], n_cls), dtype=jnp.float32).astype(dtype)
        ct = (jax.random.uniform(k3, (mask_shape[0], n_cls)) > 0.5).astype(dtype)
        return m, t, c, ct

    cases = [
        ((2, 4, 16, 16), 4, jnp.float32),     # primary: aligned, single 8-row tile per sample
        ((2, 5, 16, 16), 5, jnp.bfloat16),    # R=10 -> ragged 2-row tail, bf16, no padding
        ((2, 3, 10, 10), 5, jnp.bfloat16),    # N % 128 != 0 -> lane-pad path
        ((2, 5, 320, 256), 3, jnp.float32),   # R=3200 -> 2 streamed tiles + partial-tile mask
        ((1, 6, 256, 256), 4, jnp.float32),   # B=1 -> dual-TensorCore split of the tile axis
    ]

    ki = 0
    for mask_shape, n_cls, dtype in cases:
        m, t, c, ct = make_case(keys[ki], keys[ki + 1], keys[ki + 2], keys[ki + 3],
                                mask_shape, n_cls, dtype)
        ki += 4
        dice, cls = mixed_loss(m, t, c, ct)
        jax.block_until_ready((dice, cls))
        ref_dice, ref_cls = _reference(m, t, c, ct)
        assert jnp.allclose(dice, ref_dice, atol=1e-4), (mask_shape, dtype, dice, ref_dice)
        assert jnp.allclose(cls, ref_cls, atol=1e-4), (mask_shape, dtype, cls, ref_cls)

    print("KERNEL_OK")
</pallas_src>

<mosaic_0001>
module attributes {stable_mosaic.version = 11 : i64} {
  func.func @_mixed_loss_kernel(%arg0: i32, %arg1: i32, %arg2: i32, %arg3: memref<1x8x128xf32, #tpu.memory_space<vmem>>, %arg4: memref<1x8x128xf32, #tpu.memory_space<vmem>>, %arg5: memref<2x4xf32, #tpu.memory_space<vmem>>, %arg6: memref<2x4xf32, #tpu.memory_space<vmem>>, %arg7: memref<1x1x1x128xf32, #tpu.memory_space<vmem>>, %arg8: memref<8x128xf32, #tpu.memory_space<vmem>>, %arg9: memref<8x128xf32, #tpu.memory_space<vmem>>, %arg10: memref<8x128xf32, #tpu.memory_space<vmem>>) attributes {dimension_semantics = [#tpu.dimension_semantics<parallel>, #tpu.dimension_semantics<parallel>, #tpu.dimension_semantics<arbitrary>], iteration_bounds = array<i64: 1, 2, 1>, scalar_prefetch = 0 : i64, scratch_operands = 3 : i64, tpu.core_type = #tpu.core_type<tc>, window_params = [{transform_indices = @transform_0, window_bounds = array<i64: 1, 8, 128>}, {transform_indices = @transform_1, window_bounds = array<i64: 1, 8, 128>}, {pipeline_mode = #tpu.pipeline_mode<synchronous>, transform_indices = @transform_2, window_bounds = array<i64: 2, 4>}, {pipeline_mode = #tpu.pipeline_mode<synchronous>, transform_indices = @transform_3, window_bounds = array<i64: 2, 4>}, {transform_indices = @transform_4, window_bounds = array<i64: 1, 1, 1, 128>}]} {
    %c0_i32 = arith.constant 0 : i32
    %0 = arith.cmpi eq, %arg2, %c0_i32 : i32
    %1 = arith.extui %0 : i1 to i32
    %c0_i32_0 = arith.constant 0 : i32
    %2 = arith.cmpi ne, %1, %c0_i32_0 : i32
    scf.if %2 {
      %cst_26 = arith.constant 0.000000e+00 : f32
      %52 = vector.broadcast %cst_26 : f32 to vector<8x128xf32>
      %c0_27 = arith.constant 0 : index
      %c0_28 = arith.constant 0 : index
      %53 = vector.load %arg8[%c0_27, %c0_28] : memref<8x128xf32, #tpu.memory_space<vmem>>, vector<8x128xf32>
      tpu.vector_store %arg8[%c0_27, %c0_28], %52 {strides = array<i32>} : memref<8x128xf32, #tpu.memory_space<vmem>>, vector<8x128xf32>,
      %cst_29 = arith.constant 0.000000e+00 : f32
      %54 = vector.broadcast %cst_29 : f32 to vector<8x128xf32>
      %c0_30 = arith.constant 0 : index
      %c0_31 = arith.constant 0 : index
      %55 = vector.load %arg9[%c0_30, %c0_31] : memref<8x128xf32, #tpu.memory_space<vmem>>, vector<8x128xf32>
      tpu.vector_store %arg9[%c0_30, %c0_31], %54 {strides = array<i32>} : memref<8x128xf32, #tpu.memory_space<vmem>>, vector<8x128xf32>,
      %cst_32 = arith.constant 0.000000e+00 : f32
      %56 = vector.broadcast %cst_32 : f32 to vector<8x128xf32>
      %c0_33 = arith.constant 0 : index
      %c0_34 = arith.constant 0 : index
      %57 = vector.load %arg10[%c0_33, %c0_34] : memref<8x128xf32, #tpu.memory_space<vmem>>, vector<8x128xf32>
      tpu.vector_store %arg10[%c0_33, %c0_34], %56 {strides = array<i32>} : memref<8x128xf32, #tpu.memory_space<vmem>>, vector<8x128xf32>,
    } else {
    }
    %cst = arith.constant 0.000000e+00 : f32
    %3 = vector.broadcast %cst : f32 to vector<8x128xf32>
    %c0_i32_1 = arith.constant 0 : i32
    %c8_i32 = arith.constant 8 : i32
    %4 = arith.muli %c0_i32_1, %c8_i32 : i32
    %5 = tpu.assume_multiple %4, 8 : i32
    %c0 = arith.constant 0 : index
    %6 = arith.index_cast %5 : i32 to index
    %c0_2 = arith.constant 0 : index
    %7 = vector.load %arg3[%c0, %6, %c0_2] : memref<1x8x128xf32, #tpu.memory_space<vmem>>, vector<1x8x128xf32>
    %8 = vector.shape_cast %7 : vector<1x8x128xf32> to vector<8x128xf32>
    %c0_3 = arith.constant 0 : index
    %9 = arith.index_cast %5 : i32 to index
    %c0_4 = arith.constant 0 : index
    %10 = vector.load %arg4[%c0_3, %9, %c0_4] : memref<1x8x128xf32, #tpu.memory_space<vmem>>, vector<1x8x128xf32>
    %11 = vector.shape_cast %10 : vector<1x8x128xf32> to vector<8x128xf32>
    %12 = arith.negf %8 : vector<8x128xf32>
    %13 = math.exp %12 : vector<8x128xf32>
    %cst_5 = arith.constant 1.000000e+00 : f32
    %14 = vector.broadcast %cst_5 : f32 to vector<8x128xf32>
    %15 = arith.addf %14, %13 : vector<8x128xf32>
    %16 = arith.divf %14, %15 : vector<8x128xf32>
    %cst_6 = arith.constant 0.000000e+00 : f32
    %17 = vector.broadcast %cst_6 : f32 to vector<8x128xf32>
    %18 = arith.maximumf %8, %17 : vector<8x128xf32>
    %19 = arith.mulf %8, %11 : vector<8x128xf32>
    %20 = arith.subf %18, %19 : vector<8x128xf32>
    %cst_7 = arith.constant 1.000000e+00 : f32
    %21 = vector.broadcast %cst_7 : f32 to vector<8x128xf32>
    %22 = arith.subf %21, %16 : vector<8x128xf32>
    %23 = arith.maximumf %16, %22 : vector<8x128xf32>
    %24 = math.log %23 : vector<8x128xf32>
    %25 = arith.subf %20, %24 : vector<8x128xf32>
    %26 = arith.mulf %16, %11 : vector<8x128xf32>
    %27 = arith.addf %16, %11 : vector<8x128xf32>
    %28 = arith.addf %3, %25 : vector<8x128xf32>
    %29 = arith.addf %3, %26 : vector<8x128xf32>
    %30 = arith.addf %3, %27 : vector<8x128xf32>
    %c1_i32 = arith.constant 1 : i32
    %c0_8 = arith.constant 0 : index
    %c0_9 = arith.constant 0 : index
    %31 = vector.load %arg8[%c0_8, %c0_9] : memref<8x128xf32, #tpu.memory_space<vmem>>, vector<8x128xf32>
    %32 = arith.addf %31, %28 : vector<8x128xf32>
    %c0_10 = arith.constant 0 : index
    %c0_11 = arith.constant 0 : index
    %33 = vector.load %arg8[%c0_10, %c0_11] : memref<8x128xf32, #tpu.memory_space<vmem>>, vector<8x128xf32>
    tpu.vector_store %arg8[%c0_10, %c0_11], %32 {strides = array<i32>} : memref<8x128xf32, #tpu.memory_space<vmem>>, vector<8x128xf32>,
    %c0_12 = arith.constant 0 : index
    %c0_13 = arith.constant 0 : index
    %34 = vector.load %arg9[%c0_12, %c0_13] : memref<8x128xf32, #tpu.memory_space<vmem>>, vector<8x128xf32>
    %35 = arith.addf %34, %29 : vector<8x128xf32>
    %c0_14 = arith.constant 0 : index
    %c0_15 = arith.constant 0 : index
    %36 = vector.load %arg9[%c0_14, %c0_15] : memref<8x128xf32, #tpu.memory_space<vmem>>, vector<8x128xf32>
    tpu.vector_store %arg9[%c0_14, %c0_15], %35 {strides = array<i32>} : memref<8x128xf32, #tpu.memory_space<vmem>>, vector<8x128xf32>,
    %c0_16 = arith.constant 0 : index
    %c0_17 = arith.constant 0 : index
    %37 = vector.load %arg10[%c0_16, %c0_17] : memref<8x128xf32, #tpu.memory_space<vmem>>, vector<8x128xf32>
    %38 = arith.addf %37, %30 : vector<8x128xf32>
    %c0_18 = arith.constant 0 : index
    %c0_19 = arith.constant 0 : index
    %39 = vector.load %arg10[%c0_18, %c0_19] : memref<8x128xf32, #tpu.memory_space<vmem>>, vector<8x128xf32>
    tpu.vector_store %arg10[%c0_18, %c0_19], %38 {strides = array<i32>} : memref<8x128xf32, #tpu.memory_space<vmem>>, vector<8x128xf32>,
    %c0_i32_20 = arith.constant 0 : i32
    %40 = arith.cmpi eq, %arg0, %c0_i32_20 : i32
    %c0_i32_21 = arith.constant 0 : i32
    %41 = arith.cmpi eq, %arg1, %c0_i32_21 : i32
    %42 = arith.andi %40, %41 : i1
    %c0_i32_22 = arith.constant 0 : i32
    %43 = arith.cmpi eq, %arg2, %c0_i32_22 : i32
    %true = arith.constant true
    %44 = arith.xori %42, %true : i1
    %45 = arith.andi %43, %44 : i1
    %46 = arith.extui %45 : i1 to i32
    %c0_i32_23 = arith.constant 0 : i32
    %47 = arith.cmpi ne, %46, %c0_i32_23 : i32
    scf.if %47 {
      %c0_26 = arith.constant 0 : index
      %c0_27 = arith.constant 0 : index
      %52 = vector.load %arg8[%c0_26, %c0_27] : memref<8x128xf32, #tpu.memory_space<vmem>>, vector<8x128xf32>
      %53 = vector.shape_cast %52 : vector<8x128xf32> to vector<1x8x128xf32>
      %cst_28 = arith.constant dense<0.000000e+00> : vector<1xf32>
      %54 = vector.multi_reduction <add>, %53, %cst_28 [1, 2] : vector<1x8x128xf32> to vector<1xf32>
      %55 = vector.shape_cast %54 : vector<1xf32> to vector<1x1x1xf32>
      %56 = vector.extract %55[0, 0, 0] : f32 from vector<1x1x1xf32>
      %c0_29 = arith.constant 0 : index
      %c0_30 = arith.constant 0 : index
      %57 = vector.load %arg9[%c0_29, %c0_30] : memref<8x128xf32, #tpu.memory_space<vmem>>, vector<8x128xf32>
      %58 = vector.shape_cast %57 : vector<8x128xf32> to vector<1x8x128xf32>
      %cst_31 = arith.constant dense<0.000000e+00> : vector<1xf32>
      %59 = vector.multi_reduction <add>, %58, %cst_31 [1, 2] : vector<1x8x128xf32> to vector<1xf32>
      %60 = vector.shape_cast %59 : vector<1xf32> to vector<1x1x1xf32>
      %61 = vector.extract %60[0, 0, 0] : f32 from vector<1x1x1xf32>
      %c0_32 = arith.constant 0 : index
      %c0_33 = arith.constant 0 : index
      %62 = vector.load %arg10[%c0_32, %c0_33] : memref<8x128xf32, #tpu.memory_space<vmem>>, vector<8x128xf32>
      %63 = vector.shape_cast %62 : vector<8x128xf32> to vector<1x8x128xf32>
      %cst_34 = arith.constant dense<0.000000e+00> : vector<1xf32>
      %64 = vector.multi_reduction <add>, %63, %cst_34 [1, 2] : vector<1x8x128xf32> to vector<1xf32>
      %65 = vector.shape_cast %64 : vector<1xf32> to vector<1x1x1xf32>
      %66 = vector.extract %65[0, 0, 0] : f32 from vector<1x1x1xf32>
      %67 = tpu.iota {dimensions = array<i32: 3>} : vector<1x1x1x128xi32>
      %c0_i32_35 = arith.constant 0 : i32
      %68 = vector.broadcast %c0_i32_35 : i32 to vector<1x1x1x128xi32>
      %69 = arith.cmpi eq, %67, %68 : vector<1x1x1x128xi32>
      %cst_36 = arith.constant 0.000000e+00 : f32
      %70 = vector.broadcast %56 : f32 to vector<1x1x1x128xf32>
      %71 = vector.broadcast %cst_36 : f32 to vector<1x1x1x128xf32>
      %72 = arith.select %69, %70, %71 : vector<1x1x1x128xi1>, vector<1x1x1x128xf32>
      %c1_i32_37 = arith.constant 1 : i32
      %73 = vector.broadcast %c1_i32_37 : i32 to vector<1x1x1x128xi32>
      %74 = arith.cmpi eq, %67, %73 : vector<1x1x1x128xi32>
      %75 = vector.broadcast %61 : f32 to vector<1x1x1x128xf32>
      %76 = arith.select %74, %75, %72 : vector<1x1x1x128xi1>, vector<1x1x1x128xf32>
      %c2_i32 = arith.constant 2 : i32
      %77 = vector.broadcast %c2_i32 : i32 to vector<1x1x1x128xi32>
      %78 = arith.cmpi eq, %67, %77 : vector<1x1x1x128xi32>
      %79 = vector.broadcast %66 : f32 to vector<1x1x1x128xf32>
      %80 = arith.select %78, %79, %76 : vector<1x1x1x128xi1>, vector<1x1x1x128xf32>
      %c0_38 = arith.constant 0 : index
      %c0_39 = arith.constant 0 : index
      %c0_40 = arith.constant 0 : index
      %c0_41 = arith.constant 0 : index
      %81 = vector.load %arg7[%c0_38, %c0_39, %c0_40, %c0_41] : memref<1x1x1x128xf32, #tpu.memory_space<vmem>>, vector<1x1x1x128xf32>
      tpu.vector_store %arg7[%c0_38, %c0_39, %c0_40, %c0_41], %80 {strides = array<i32>} : memref<1x1x1x128xf32, #tpu.memory_space<vmem>>, vector<1x1x1x128xf32>,
    } else {
    }
    %c0_i32_24 = arith.constant 0 : i32
    %48 = arith.cmpi eq, %arg2, %c0_i32_24 : i32
    %49 = arith.andi %48, %42 : i1
    %50 = arith.extui %49 : i1 to i32
    %c0_i32_25 = arith.constant 0 : i32
    %51 = arith.cmpi ne, %50, %c0_i32_25 : i32
    scf.if %51 {
      %c0_26 = arith.constant 0 : index
      %c0_27 = arith.constant 0 : index
      %52 = vector.load %arg8[%c0_26, %c0_27] : memref<8x128xf32, #tpu.memory_space<vmem>>, vector<8x128xf32>
      %53 = vector.shape_cast %52 : vector<8x128xf32> to vector<1x8x128xf32>
      %cst_28 = arith.constant dense<0.000000e+00> : vector<1xf32>
      %54 = vector.multi_reduction <add>, %53, %cst_28 [1, 2] : vector<1x8x128xf32> to vector<1xf32>
      %55 = vector.shape_cast %54 : vector<1xf32> to vector<1x1x1xf32>
      %56 = vector.extract %55[0, 0, 0] : f32 from vector<1x1x1xf32>
      %c0_29 = arith.constant 0 : index
      %c0_30 = arith.constant 0 : index
      %57 = vector.load %arg9[%c0_29, %c0_30] : memref<8x128xf32, #tpu.memory_space<vmem>>, vector<8x128xf32>
      %58 = vector.shape_cast %57 : vector<8x128xf32> to vector<1x8x128xf32>
      %cst_31 = arith.constant dense<0.000000e+00> : vector<1xf32>
      %59 = vector.multi_reduction <add>, %58, %cst_31 [1, 2] : vector<1x8x128xf32> to vector<1xf32>
      %60 = vector.shape_cast %59 : vector<1xf32> to vector<1x1x1xf32>
      %61 = vector.extract %60[0, 0, 0] : f32 from vector<1x1x1xf32>
      %c0_32 = arith.constant 0 : index
      %c0_33 = arith.constant 0 : index
      %62 = vector.load %arg10[%c0_32, %c0_33] : memref<8x128xf32, #tpu.memory_space<vmem>>, vector<8x128xf32>
      %63 = vector.shape_cast %62 : vector<8x128xf32> to vector<1x8x128xf32>
      %cst_34 = arith.constant dense<0.000000e+00> : vector<1xf32>
      %64 = vector.multi_reduction <add>, %63, %cst_34 [1, 2] : vector<1x8x128xf32> to vector<1xf32>
      %65 = vector.shape_cast %64 : vector<1xf32> to vector<1x1x1xf32>
      %66 = vector.extract %65[0, 0, 0] : f32 from vector<1x1x1xf32>
      %67 = tpu.iota {dimensions = array<i32: 3>} : vector<1x1x1x128xi32>
      %c0_i32_35 = arith.constant 0 : i32
      %68 = vector.broadcast %c0_i32_35 : i32 to vector<1x1x1x128xi32>
      %69 = arith.cmpi eq, %67, %68 : vector<1x1x1x128xi32>
      %cst_36 = arith.constant 0.000000e+00 : f32
      %70 = vector.broadcast %56 : f32 to vector<1x1x1x128xf32>
      %71 = vector.broadcast %cst_36 : f32 to vector<1x1x1x128xf32>
      %72 = arith.select %69, %70, %71 : vector<1x1x1x128xi1>, vector<1x1x1x128xf32>
      %c1_i32_37 = arith.constant 1 : i32
      %73 = vector.broadcast %c1_i32_37 : i32 to vector<1x1x1x128xi32>
      %74 = arith.cmpi eq, %67, %73 : vector<1x1x1x128xi32>
      %75 = vector.broadcast %61 : f32 to vector<1x1x1x128xf32>
      %76 = arith.select %74, %75, %72 : vector<1x1x1x128xi1>, vector<1x1x1x128xf32>
      %c2_i32 = arith.constant 2 : i32
      %77 = vector.broadcast %c2_i32 : i32 to vector<1x1x1x128xi32>
      %78 = arith.cmpi eq, %67, %77 : vector<1x1x1x128xi32>
      %79 = vector.broadcast %66 : f32 to vector<1x1x1x128xf32>
      %80 = arith.select %78, %79, %76 : vector<1x1x1x128xi1>, vector<1x1x1x128xf32>
      %c0_38 = arith.constant 0 : index
      %c0_39 = arith.constant 0 : index
      %81 = vector.load %arg5[%c0_38, %c0_39] : memref<2x4xf32, #tpu.memory_space<vmem>>, vector<2x4xf32>
      %c0_40 = arith.constant 0 : index
      %c0_41 = arith.constant 0 : index
      %82 = vector.load %arg6[%c0_40, %c0_41] : memref<2x4xf32, #tpu.memory_space<vmem>>, vector<2x4xf32>
      %83 = arith.negf %81 : vector<2x4xf32>
      %84 = math.exp %83 : vector<2x4xf32>
      %cst_42 = arith.constant 1.000000e+00 : f32
      %85 = vector.broadcast %cst_42 : f32 to vector<2x4xf32>
      %86 = arith.addf %85, %84 : vector<2x4xf32>
      %87 = arith.divf %85, %86 : vector<2x4xf32>
      %cst_43 = arith.constant 0.000000e+00 : f32
      %88 = vector.broadcast %cst_43 : f32 to vector<2x4xf32>
      %89 = arith.maximumf %81, %88 : vector<2x4xf32>
      %90 = arith.mulf %81, %82 : vector<2x4xf32>
      %91 = arith.subf %89, %90 : vector<2x4xf32>
      %cst_44 = arith.constant 1.000000e+00 : f32
      %92 = vector.broadcast %cst_44 : f32 to vector<2x4xf32>
      %93 = arith.subf %92, %87 : vector<2x4xf32>
      %94 = arith.maximumf %87, %93 : vector<2x4xf32>
      %95 = math.log %94 : vector<2x4xf32>
      %96 = arith.subf %91, %95 : vector<2x4xf32>
      %c3_i32 = arith.constant 3 : i32
      %97 = vector.broadcast %c3_i32 : i32 to vector<1x1x1x128xi32>
      %98 = arith.cmpi eq, %67, %97 : vector<1x1x1x128xi32>
      %99 = vector.shape_cast %96 : vector<2x4xf32> to vector<1x2x4xf32>
      %cst_45 = arith.constant dense<0.000000e+00> : vector<1xf32>
      %100 = vector.multi_reduction <add>, %99, %cst_45 [1, 2] : vector<1x2x4xf32> to vector<1xf32>
      %101 = vector.shape_cast %100 : vector<1xf32> to vector<1x1x1xf32>
      %102 = vector.extract %101[0, 0, 0] : f32 from vector<1x1x1xf32>
      %103 = vector.broadcast %102 : f32 to vector<1x1x1x128xf32>
      %104 = arith.select %98, %103, %80 : vector<1x1x1x128xi1>, vector<1x1x1x128xf32>
      %c0_46 = arith.constant 0 : index
      %c0_47 = arith.constant 0 : index
      %c0_48 = arith.constant 0 : index
      %c0_49 = arith.constant 0 : index
      %105 = vector.load %arg7[%c0_46, %c0_47, %c0_48, %c0_49] : memref<1x1x1x128xf32, #tpu.memory_space<vmem>>, vector<1x1x1x128xf32>
      tpu.vector_store %arg7[%c0_46, %c0_47, %c0_48, %c0_49], %104 {strides = array<i32>} : memref<1x1x1x128xf32, #tpu.memory_space<vmem>>, vector<1x1x1x128xf32>,
    } else {
    }
    return
  }
  func.func @transform_0(%arg0: i32, %arg1: i32, %arg2: i32) -> (i32, i32, i32) {
    %c1_i32 = arith.constant 1 : i32
    %0 = arith.muli %arg0, %c1_i32 : i32
    %1 = arith.addi %0, %arg2 : i32
    %c0_i32 = arith.constant 0 : i32
    %2 = arith.minsi %1, %c0_i32 : i32
    %c0_i32_0 = arith.constant 0 : i32
    %c0_i32_1 = arith.constant 0 : i32
    return %arg1, %2, %c0_i32_0 : i32, i32, i32
  }
  func.func @transform_1(%arg0: i32, %arg1: i32, %arg2: i32) -> (i32, i32, i32) {
    %c1_i32 = arith.constant 1 : i32
    %0 = arith.muli %arg0, %c1_i32 : i32
    %1 = arith.addi %0, %arg2 : i32
    %c0_i32 = arith.constant 0 : i32
    %2 = arith.minsi %1, %c0_i32 : i32
    %c0_i32_0 = arith.constant 0 : i32
    %c0_i32_1 = arith.constant 0 : i32
    return %arg1, %2, %c0_i32_0 : i32, i32, i32
  }
  func.func @transform_2(%arg0: i32, %arg1: i32, %arg2: i32) -> (i32, i32) {
    %c0_i32 = arith.constant 0 : i32
    %c0_i32_0 = arith.constant 0 : i32
    %c0_i32_1 = arith.constant 0 : i32
    return %c0_i32, %c0_i32_0 : i32, i32
  }
  func.func @transform_3(%arg0: i32, %arg1: i32, %arg2: i32) -> (i32, i32) {
    %c0_i32 = arith.constant 0 : i32
    %c0_i32_0 = arith.constant 0 : i32
    %c0_i32_1 = arith.constant 0 : i32
    return %c0_i32, %c0_i32_0 : i32, i32
  }
  func.func @transform_4(%arg0: i32, %arg1: i32, %arg2: i32) -> (i32, i32, i32, i32) {
    %c0_i32 = arith.constant 0 : i32
    %c0_i32_0 = arith.constant 0 : i32
    %c0_i32_1 = arith.constant 0 : i32
    return %arg0, %arg1, %c0_i32, %c0_i32_0 : i32, i32, i32, i32
  }
}

</mosaic_0001>

<llo_original>
// kernel: tpu_custom_call.1
$region0: #{tpu_custom_call.1}
  #allocation0 [shape = 'u32[]', space=smem, size = 0x4, offset = 0x4, fixed_abs, tag = 'smem constant byte address 0x4 - core index']
  #allocation1 [shape = 'u32[144,128]{1,0:T(1,128)}', space=vmem, size = 0x12000, scoped, tag = 'internal scratch']
  #allocation2 [shape = 'f32[8,128]{1,0:T(8,128)}', space=vmem, size = 0x1000, scoped, tag = 'scratch operand']
  #allocation3 [shape = 'f32[8,128]{1,0:T(8,128)}', space=vmem, size = 0x1000, scoped, tag = 'scratch operand']
  #allocation4 [shape = 'f32[8,128]{1,0:T(8,128)}', space=vmem, size = 0x1000, scoped, tag = 'scratch operand']
  %s0 = inlined_call_operand.hbm [shape: f32[2,8,128], index: 0, kind: input, shape index: {}]
  %s1 = inlined_call_operand.hbm [shape: f32[2,8,128], index: 1, kind: input, shape index: {}]
  %s2 = inlined_call_operand.vmem [shape: f32[2,4], index: 2, kind: input, shape index: {}]
  %s3 = inlined_call_operand.vmem [shape: f32[2,4], index: 3, kind: input, shape index: {}]
  %s4 = inlined_call_operand.hbm [shape: f32[1,2,1,128], index: 4, kind: output, shape index: {}]
  %s5 = sld [smem:[#allocation0]]
  $region69: #{tpu_custom_call.1} parent=0
    _
  %s7 = ssub.s32 1, %s5
  %s8 = scalar_select 0, %s7, %s5
  $region1: #{tpu_custom_call.1} parent=0
    #allocation5 [shape = 'u8[8192]{0}', space=vmem, size = 0x2000, scoped, tag = 'input window, operand 0']
    #allocation6 [shape = 's32[2]{0}', space=sflag, size = 0x8, scoped, tag = 'scoped memory for tpu_custom_call.1']
    #allocation7 [shape = 's32[2]{0}', space=sflag, size = 0x8, scoped, tag = 'scoped memory for tpu_custom_call.1']
    #allocation8 [shape = 'u8[8192]{0}', space=vmem, size = 0x2000, scoped, tag = 'input window, operand 1']
    #allocation9 [shape = 's32[2]{0}', space=sflag, size = 0x8, scoped, tag = 'scoped memory for tpu_custom_call.1']
    #allocation10 [shape = 'u8[1024]{0}', space=vmem, size = 0x400, scoped, tag = 'output window, operand 0']
    %9 = vsyncpa [#allocation6], 0
    %s10 = scalar_lea.sflag [#allocation6], 1
    %11 = vsyncpa %s10, 0
    %12 = vsyncpa [#allocation9], 0
    %s13 = scalar_lea.sflag [#allocation9], 1
    %14 = vsyncpa %s13, 0
    %15 = vsyncpa [#allocation7], 0
    %s16 = scalar_lea.sflag [#allocation7], 1
    %17 = vsyncpa %s16, 0
    loop: start=0, step=1, limit=4
    $region2: #{tpu_custom_call.1} parent=1 // loop_pre_header
      _
    $region3: #{tpu_custom_call.1} parent=1 // loop_header
      %s19 = sphi 0, %s23
      %p20 = scmp.ge.s32.totalorder %s19, 4
      %s26 = sphi 0, %s45
      %s27 = sphi 0, %s41
      %s28 = sphi 0, %s37
      %s29 = sphi 0, %s26
      %s30 = sphi 0, %s27
      %s31 = sphi 0, %s28
      %s32 = sphi 0, %s29
      %s33 = sphi 0, %s30
      %s34 = sphi 0, %s31
      %s56 = sphi 0, %s58
      %s59 = sphi 0, %s56
      %s60 = sphi 0, %s59
      %s76 = sphi 0, %s60
      %s90 = sphi 0, %s92
      %s93 = sphi 0, %s90
      %s94 = sphi 0, %s93
      %s110 = sphi 0, %s94
      %s114 = sphi 0, %s114
      %s116 = sphi 0, %s114
      %s117 = sphi 0, %s116
      %s131 = sphi 0, %s117
      %s135 = sphi 0, %s135
      %s137 = sphi 0, %s135
      %s138 = sphi 0, %s137
      %s152 = sphi 0, %s138
      %s160 = sphi 0, %s162
      %s163 = sphi 0, %s160
      %s164 = sphi 0, %s163
      %s180 = sphi 0, %s164
    $region4: #{tpu_custom_call.1} parent=1 // loop_header_branch
      %22 = sbr.rel (%p20) target = $region8
    $region5: #{tpu_custom_call.1} parent=1 // loop_body
      %s24 = ssub.s32 %s19, 1
      %s25 = ssub.s32 %s19, 2
      %s35 = sadd.s32 1, %s28
      %p36 = scmp.ge.s32.totalorder %s35, 1
      %s37 = scalar_select %p36, 0, %s35
      %s38 = sadd.s32 1, %s27
      %s39 = scalar_select %p36, %s38, %s27
      %p40 = scmp.ge.s32.totalorder %s39, 2
      %s41 = scalar_select %p40, 0, %s39
      %s42 = sadd.s32 1, %s26
      %s43 = scalar_select %p40, %s42, %s26
      %p44 = scmp.ge.s32.totalorder %s43, 1
      %s45 = scalar_select %p44, 0, %s43
      %s46 = sadd.s32 %s26, %s28
      %p47 = scmp.lt.s32.totalorder %s46, 0
      %s48 = scalar_select %p47, %s46, 0
      %s49 = sadd.s32 %s45, %s37
      %p50 = scmp.lt.s32.totalorder %s49, 0
      %s51 = scalar_select %p50, %s49, 0
      %s52 = ssub.s32 %s27, %s41
      %s53 = ssub.s32 %s48, %s51
      %s54 = sor.u32 %s52, %s53
      %p55 = scmp.eq.s32.totalorder %s54, 0
      %s57 = sadd.s32 %s56, 1
      %s58 = scalar_select %p55, %s56, %s57
      %p61 = pneg %p55
      %p62 = scmp.eq.s32.totalorder %s19, 1
      %p63 = por %p61, %p62
      %p64 = scmp.ne.s32.totalorder %s56, %s59
      %p65 = scmp.eq.s32.totalorder %s19, 0
      %p66 = por %p64, %p65
      %p67 = scmp.ne.s32.totalorder %s56, %s59
      %p68 = scmp.eq.s32.totalorder %s24, 1
      %p69 = por %p67, %p68
      %p70 = scmp.ne.s32.totalorder %s59, %s60
      %p71 = scmp.eq.s32.totalorder %s24, 0
      %p72 = por %p70, %p71
      %p73 = scmp.ne.s32.totalorder %s59, %s60
      %p74 = scmp.eq.s32.totalorder %s25, 1
      %p75 = por %p73, %p74
      %p77 = scmp.ne.s32.totalorder %s60, %s76
      %p78 = scmp.eq.s32.totalorder %s25, 0
      %p79 = por %p77, %p78
      %s80 = sadd.s32 %s26, %s28
      %p81 = scmp.lt.s32.totalorder %s80, 0
      %s82 = scalar_select %p81, %s80, 0
      %s83 = sadd.s32 %s45, %s37
      %p84 = scmp.lt.s32.totalorder %s83, 0
      %s85 = scalar_select %p84, %s83, 0
      %s86 = ssub.s32 %s27, %s41
      %s87 = ssub.s32 %s82, %s85
      %s88 = sor.u32 %s86, %s87
      %p89 = scmp.eq.s32.totalorder %s88, 0
      %s91 = sadd.s32 %s90, 1
      %s92 = scalar_select %p89, %s90, %s91
      %p95 = pneg %p89
      %p96 = scmp.eq.s32.totalorder %s19, 1
      %p97 = por %p95, %p96
      %p98 = scmp.ne.s32.totalorder %s90, %s93
      %p99 = scmp.eq.s32.totalorder %s19, 0
      %p100 = por %p98, %p99
      %p101 = scmp.ne.s32.totalorder %s90, %s93
      %p102 = scmp.eq.s32.totalorder %s24, 1
      %p103 = por %p101, %p102
      %p104 = scmp.ne.s32.totalorder %s93, %s94
      %p105 = scmp.eq.s32.totalorder %s24, 0
      %p106 = por %p104, %p105
      %p107 = scmp.ne.s32.totalorder %s93, %s94
      %p108 = scmp.eq.s32.totalorder %s25, 1
      %p109 = por %p107, %p108
      %p111 = scmp.ne.s32.totalorder %s94, %s110
      %p112 = scmp.eq.s32.totalorder %s25, 0
      %p113 = por %p111, %p112
      %s115 = sadd.s32 %s114, 1
      %p118 = scmp.eq.s32.totalorder %s19, 1
      %p119 = scmp.ne.s32.totalorder %s114, %s116
      %p120 = scmp.eq.s32.totalorder %s19, 0
      %p121 = por %p119, %p120
      %p122 = scmp.ne.s32.totalorder %s114, %s116
      %p123 = scmp.eq.s32.totalorder %s24, 1
      %p124 = por %p122, %p123
      %p125 = scmp.ne.s32.totalorder %s116, %s117
      %p126 = scmp.eq.s32.totalorder %s24, 0
      %p127 = por %p125, %p126
      %p128 = scmp.ne.s32.totalorder %s116, %s117
      %p129 = scmp.eq.s32.totalorder %s25, 1
      %p130 = por %p128, %p129
      %p132 = scmp.ne.s32.totalorder %s117, %s131
      %p133 = scmp.eq.s32.totalorder %s25, 0
      %p134 = por %p132, %p133
      %s136 = sadd.s32 %s135, 1
      %p139 = scmp.eq.s32.totalorder %s19, 1
      %p140 = scmp.ne.s32.totalorder %s135, %s137
      %p141 = scmp.eq.s32.totalorder %s19, 0
      %p142 = por %p140, %p141
      %p143 = scmp.ne.s32.totalorder %s135, %s137
      %p144 = scmp.eq.s32.totalorder %s24, 1
      %p145 = por %p143, %p144
      %p146 = scmp.ne.s32.totalorder %s137, %s138
      %p147 = scmp.eq.s32.totalorder %s24, 0
      %p148 = por %p146, %p147
      %p149 = scmp.ne.s32.totalorder %s137, %s138
      %p150 = scmp.eq.s32.totalorder %s25, 1
      %p151 = por %p149, %p150
      %p153 = scmp.ne.s32.totalorder %s138, %s152
      %p154 = scmp.eq.s32.totalorder %s25, 0
      %p155 = por %p153, %p154
      %s156 = ssub.s32 %s26, %s45
      %s157 = ssub.s32 %s27, %s41
      %s158 = sor.u32 %s156, %s157
      %p159 = scmp.eq.s32.totalorder %s158, 0
      %s161 = sadd.s32 %s160, 1
      %s162 = scalar_select %p159, %s160, %s161
      %p165 = pneg %p159
      %p166 = scmp.eq.s32.totalorder %s19, 1
      %p167 = por %p165, %p166
      %p168 = scmp.ne.s32.totalorder %s160, %s163
      %p169 = scmp.eq.s32.totalorder %s19, 0
      %p170 = por %p168, %p169
      %p171 = scmp.ne.s32.totalorder %s160, %s163
      %p172 = scmp.eq.s32.totalorder %s24, 1
      %p173 = por %p171, %p172
      %p174 = scmp.ne.s32.totalorder %s163, %s164
      %p175 = scmp.eq.s32.totalorder %s24, 0
      %p176 = por %p174, %p175
      %p177 = scmp.ne.s32.totalorder %s163, %s164
      %p178 = scmp.eq.s32.totalorder %s25, 1
      %p179 = por %p177, %p178
      %p181 = scmp.ne.s32.totalorder %s164, %s180
      %p182 = scmp.eq.s32.totalorder %s25, 0
      %p183 = por %p181, %p182
      %p184 = scmp.le.s32.totalorder 1, %s19
      %p185 = scmp.lt.s32.totalorder %s19, 3
      %p186 = pnand %p184, %p185
      %p187 = pneg %p186
      // Predicated region
      $region9: #{tpu_custom_call.1} parent=5 // pred_check
        _
      $region10: #{tpu_custom_call.1} parent=5 // pred_check_branch
        %189 = sbr.rel (%p186) target = $region12
      $region11: #{tpu_custom_call.1} parent=5 // pred_region
        %s190 = ssub.s32 %s19, 1
        // Predicated region
        $region13: #{tpu_custom_call.1} parent=11 // pred_check
          %p191 = pneg %p127
        $region14: #{tpu_custom_call.1} parent=11 // pred_check_branch
          %193 = sbr.rel (%p191) target = $region16
        $region15: #{tpu_custom_call.1} parent=11 // pred_region
          _
        $region16: #{tpu_custom_call.1} parent=11 // pred_fallthru
          _
        // Predicated region
        $region17: #{tpu_custom_call.1} parent=11 // pred_check
          %p194 = pneg %p148
        $region18: #{tpu_custom_call.1} parent=11 // pred_check_branch
          %196 = sbr.rel (%p194) target = $region20
        $region19: #{tpu_custom_call.1} parent=11 // pred_region
          _
        $region20: #{tpu_custom_call.1} parent=11 // pred_fallthru
          _
      $region12: #{tpu_custom_call.1} parent=5 // pred_fallthru
        _
      %p197 = scmp.lt.s32.totalorder %s19, 2
      // Predicated region
      $region21: #{tpu_custom_call.1} parent=5 // pred_check
        %p198 = pneg %p197
      $region22: #{tpu_custom_call.1} parent=5 // pred_check_branch
        %200 = sbr.rel (%p198) target = $region24
      $region23: #{tpu_custom_call.1} parent=5 // pred_region
        // Predicated region
        $region25: #{tpu_custom_call.1} parent=23 // pred_check
          %p201 = pneg %p66
        $region26: #{tpu_custom_call.1} parent=23 // pred_check_branch
          %203 = sbr.rel (%p201) target = $region28
        $region27: #{tpu_custom_call.1} parent=23 // pred_region
          %s204 = sand.u32 %s56, 1
          %s205 = scalar_lea.sflag [#allocation6], %s204
          %s206 = sand.u32 %s56, 1
          %s207 = smul.addr %s206, 8
          %s208 = scalar_lea.vmem [#allocation5], %s207
          %s209 = sadd.s32 %s26, %s28
          %p210 = scmp.lt.s32.totalorder %s209, 0
          %s211 = scalar_select %p210, %s209, 0
          %s213 = ssub.s32 128, 128
          %214 = vsyncadd %s205, %s213
          %s215 = sadd.s32 %s211, %s27
          %s216 = smul.addr %s215, 128
          %s217 = scalar_lea.hbm %s0, %s216
          %s219 = sshll.u32 %s208, 4
          %s220 = int_to_ptr.vmem [resolvable:$true] %s219
          %222 = dma.hbm_to_vmem [thread:$0]  %s217, 128, %s220, %s205
        $region28: #{tpu_custom_call.1} parent=23 // pred_fallthru
          _
        // Predicated region
        $region29: #{tpu_custom_call.1} parent=23 // pred_check
          %p223 = pneg %p100
        $region30: #{tpu_custom_call.1} parent=23 // pred_check_branch
          %225 = sbr.rel (%p223) target = $region32
        $region31: #{tpu_custom_call.1} parent=23 // pred_region
          %s226 = sand.u32 %s90, 1
          %s227 = scalar_lea.sflag [#allocation9], %s226
          %s228 = sand.u32 %s90, 1
          %s229 = smul.addr %s228, 8
          %s230 = scalar_lea.vmem [#allocation8], %s229
          %s231 = sadd.s32 %s26, %s28
          %p232 = scmp.lt.s32.totalorder %s231, 0
          %s233 = scalar_select %p232, %s231, 0
          %s235 = ssub.s32 128, 128
          %236 = vsyncadd %s227, %s235
          %s237 = sadd.s32 %s233, %s27
          %s238 = smul.addr %s237, 128
          %s239 = scalar_lea.hbm %s1, %s238
          %s241 = sshll.u32 %s230, 4
          %s242 = int_to_ptr.vmem [resolvable:$true] %s241
          %244 = dma.hbm_to_vmem [thread:$0]  %s239, 128, %s242, %s227
        $region32: #{tpu_custom_call.1} parent=23 // pred_fallthru
          _
      $region24: #{tpu_custom_call.1} parent=5 // pred_fallthru
        _
      %p245 = scmp.le.s32.totalorder 1, %s19
      %p246 = scmp.lt.s32.totalorder %s19, 3
      %p247 = pnand %p245, %p246
      %p248 = pneg %p247
      // Predicated region
      $region33: #{tpu_custom_call.1} parent=5 // pred_check
        _
      $region34: #{tpu_custom_call.1} parent=5 // pred_check_branch
        %250 = sbr.rel (%p247) target = $region36
      $region35: #{tpu_custom_call.1} parent=5 // pred_region
        %s251 = ssub.s32 %s19, 1
        %s252 = sand.u32 %s59, 1
        %s253 = scalar_lea.sflag [#allocation6], %s252
        %s254 = sand.u32 %s59, 1
        %s255 = smul.addr %s254, 8
        %s256 = scalar_lea.vmem [#allocation5], %s255
        // Predicated region
        $region37: #{tpu_custom_call.1} parent=35 // pred_check
          %p257 = pneg %p72
        $region38: #{tpu_custom_call.1} parent=35 // pred_check_branch
          %259 = sbr.rel (%p257) target = $region40
        $region39: #{tpu_custom_call.1} parent=35 // pred_region
          %260 = dma.done %s253, 128
        $region40: #{tpu_custom_call.1} parent=35 // pred_fallthru
          _
        %s261 = sand.u32 %s93, 1
        %s262 = scalar_lea.sflag [#allocation9], %s261
        %s263 = sand.u32 %s93, 1
        %s264 = smul.addr %s263, 8
        %s265 = scalar_lea.vmem [#allocation8], %s264
        // Predicated region
        $region41: #{tpu_custom_call.1} parent=35 // pred_check
          %p266 = pneg %p106
        $region42: #{tpu_custom_call.1} parent=35 // pred_check_branch
          %268 = sbr.rel (%p266) target = $region44
        $region43: #{tpu_custom_call.1} parent=35 // pred_region
          %269 = dma.done %s262, 128
        $region44: #{tpu_custom_call.1} parent=35 // pred_fallthru
          _
        %s270 = sand.u32 %s59, 1
        %s271 = scalar_lea.sflag [#allocation6], %s270
        %s272 = sand.u32 %s59, 1
        %s273 = smul.addr %s272, 8
        %s274 = scalar_lea.vmem [#allocation5], %s273
        %p275 = pneg %p72
        %p276 = pneg %p69
        %s277 = sand.u32 %s93, 1
        %s278 = scalar_lea.sflag [#allocation9], %s277
        %s279 = sand.u32 %s93, 1
        %s280 = smul.addr %s279, 8
        %s281 = scalar_lea.vmem [#allocation8], %s280
        %p282 = pneg %p106
        %p283 = pneg %p103
        %p284 = pneg %p127
        %p285 = pneg %p124
        %p286 = pneg %p148
        %p287 = pneg %p145
        %p288 = pneg %p176
        %p289 = pneg %p173
        %s290 = sand.u32 %s163, 1
        %s291 = scalar_lea.sflag [#allocation7], %s290
        %s292 = sand.u32 %s163, 1
        %s293 = scalar_lea.vmem [#allocation10], %s292
        %s294 = sadd.s32 %s29, %s31
        %p295 = scmp.lt.s32.totalorder %s294, 0
        %s296 = scalar_select %p295, %s294, 0
        %s297 = sadd.s32 %s29, %s31
        %p298 = scmp.lt.s32.totalorder %s297, 0
        %s299 = scalar_select %p298, %s297, 0
        %p300 = scmp.eq.s32.totalorder %s31, 0
        // Predicated region
        $region45: #{tpu_custom_call.1} parent=35 // pred_check
          %p301 = pneg %p300
        $region46: #{tpu_custom_call.1} parent=35 // pred_check_branch
          %303 = sbr.rel (%p301) target = $region48
        $region47: #{tpu_custom_call.1} parent=35 // pred_region
          %304 = vst [vmem:[#allocation2] sm:$0xff] 0.0
          %305 = vst [vmem:[#allocation3] sm:$0xff] 0.0
          %306 = vst [vmem:[#allocation4] sm:$0xff] 0.0
        $region48: #{tpu_custom_call.1} parent=35 // pred_fallthru
          _
        %v307 = vld [vmem:[%s256] sm:$0xff]
        %v308 = vld [vmem:[%s265] sm:$0xff]
        %v309 = vxor.u32 %v307, 2147483648
        %v310 = vmul.f32 %v309, 1.442695
        %v311 = vpow.pop %v310
        %v312 = vadd.f32 %v311, 1.0
        %v313 = vrcp.pop %v312
        %v314 = vmul.f32 1.0, %v313
        %v315 = vmax.f32 %v307, 0.0
        %v316 = vmul.f32 %v307, %v308
        %v317 = vsub.f32 %v315, %v316
        %v318 = vsub.f32 1.0, %v314
        %v319 = vmax.f32 %v314, %v318
        %v320 = vlog2.pop %v319
        %v321 = vmul.f32 %v320, 0.6931472
        %v322 = vsub.f32 %v317, %v321
        %v323 = vmul.f32 %v314, %v308
        %v324 = vadd.f32 %v314, %v308
        %v325 = vadd.f32 %v322, 0.0
        %v326 = vadd.f32 %v323, 0.0
        %v327 = vadd.f32 %v324, 0.0
        %v328 = vld [vmem:[#allocation2] sm:$0xff]
        %v329 = vadd.f32 %v328, %v325
        %330 = vst [vmem:[#allocation2] sm:$0xff] %v329
        %v331 = vld [vmem:[#allocation3] sm:$0xff]
        %v332 = vadd.f32 %v331, %v326
        %333 = vst [vmem:[#allocation3] sm:$0xff] %v332
        %v334 = vld [vmem:[#allocation4] sm:$0xff]
        %v335 = vadd.f32 %v334, %v327
        %336 = vst [vmem:[#allocation4] sm:$0xff] %v335
        %p337 = scmp.eq.s32.totalorder %s29, 0
        %p338 = scmp.eq.s32.totalorder %s30, 0
        %p339 = pnand %p337, %p338
        %p340 = pneg %p339
        %p341 = pneg %p340
        %p342 = pnand %p300, %p341
        %p343 = pneg %p342
        // Predicated region
        $region49: #{tpu_custom_call.1} parent=35 // pred_check
          _
        $region50: #{tpu_custom_call.1} parent=35 // pred_check_branch
          %345 = sbr.rel (%p342) target = $region52
        $region51: #{tpu_custom_call.1} parent=35 // pred_region
          %v346 = vld [vmem:[#allocation2] sm:$0xff]
          %347 = vadd.xlane.f32.xlu0 %v346
          %v348 = vpop.xlane.xlu0 %347
          %v349 = vrot.slane %v348, 4
          %v350 = vadd.f32 %v348, %v349
          %v351 = vrot.slane %v350, 2
          %v352 = vadd.f32 %v350, %v351
          %v353 = vrot.slane %v352, 1
          %v354 = vadd.f32 %v352, %v353
          %s355 = vtos %v354
          %v356 = vld [vmem:[#allocation3] sm:$0xff]
          %357 = vadd.xlane.f32.xlu0 %v356
          %v358 = vpop.xlane.xlu0 %357
          %v359 = vrot.slane %v358, 4
          %v360 = vadd.f32 %v358, %v359
          %v361 = vrot.slane %v360, 2
          %v362 = vadd.f32 %v360, %v361
          %v363 = vrot.slane %v362, 1
          %v364 = vadd.f32 %v362, %v363
          %s365 = vtos %v364
          %v366 = vld [vmem:[#allocation4] sm:$0xff]
          %367 = vadd.xlane.f32.xlu0 %v366
          %v368 = vpop.xlane.xlu0 %367
          %v369 = vrot.slane %v368, 4
          %v370 = vadd.f32 %v368, %v369
          %v371 = vrot.slane %v370, 2
          %v372 = vadd.f32 %v370, %v371
          %v373 = vrot.slane %v372, 1
          %v374 = vadd.f32 %v372, %v373
          %s375 = vtos %v374
          %v376 = vlaneseq
          %v377 = vand.u32 %v376, 127
          %vm378 = vcmp.eq.s32.totalorder %v377, 0
          %v379 = vstv %s355
          %v380 = vsel %vm378, %v379, 0.0
          %vm381 = vcmp.eq.s32.totalorder %v377, 1
          %v382 = vstv %s365
          %v383 = vsel %vm381, %v382, %v380
          %vm384 = vcmp.eq.s32.totalorder %v377, 2
          %v385 = vstv %s375
          %v386 = vsel %vm384, %v385, %v383
          %387 = vst [vmem:[%s293] sm:$0x1] %v386
        $region52: #{tpu_custom_call.1} parent=35 // pred_fallthru
          _
        %p388 = pnand %p300, %p340
        %p389 = pneg %p388
        // Predicated region
        $region53: #{tpu_custom_call.1} parent=35 // pred_check
          _
        $region54: #{tpu_custom_call.1} parent=35 // pred_check_branch
          %391 = sbr.rel (%p388) target = $region56
        $region55: #{tpu_custom_call.1} parent=35 // pred_region
          %v392 = vld [vmem:[#allocation2] sm:$0xff]
          %393 = vadd.xlane.f32.xlu0 %v392
          %v394 = vpop.xlane.xlu0 %393
          %v395 = vrot.slane %v394, 4
          %v396 = vadd.f32 %v394, %v395
          %v397 = vrot.slane %v396, 2
          %v398 = vadd.f32 %v396, %v397
          %v399 = vrot.slane %v398, 1
          %v400 = vadd.f32 %v398, %v399
          %s401 = vtos %v400
          %v402 = vld [vmem:[#allocation3] sm:$0xff]
          %403 = vadd.xlane.f32.xlu0 %v402
          %v404 = vpop.xlane.xlu0 %403
          %v405 = vrot.slane %v404, 4
          %v406 = vadd.f32 %v404, %v405
          %v407 = vrot.slane %v406, 2
          %v408 = vadd.f32 %v406, %v407
          %v409 = vrot.slane %v408, 1
          %v410 = vadd.f32 %v408, %v409
          %s411 = vtos %v410
          %v412 = vld [vmem:[#allocation4] sm:$0xff]
          %413 = vadd.xlane.f32.xlu0 %v412
          %v414 = vpop.xlane.xlu0 %413
          %v415 = vrot.slane %v414, 4
          %v416 = vadd.f32 %v414, %v415
          %v417 = vrot.slane %v416, 2
          %v418 = vadd.f32 %v416, %v417
          %v419 = vrot.slane %v418, 1
          %v420 = vadd.f32 %v418, %v419
          %s421 = vtos %v420
          %v422 = vlaneseq
          %v423 = vand.u32 %v422, 127
          %vm424 = vcmp.eq.s32.totalorder %v423, 0
          %v425 = vstv %s401
          %v426 = vsel %vm424, %v425, 0.0
          %vm427 = vcmp.eq.s32.totalorder %v423, 1
          %v428 = vstv %s411
          %v429 = vsel %vm427, %v428, %v426
          %vm430 = vcmp.eq.s32.totalorder %v423, 2
          %v431 = vstv %s421
          %v432 = vsel %vm430, %v431, %v429
          %v433 = vld [vmem:[%s2] sm:$0x3]
          %v434 = vld [vmem:[%s3] sm:$0x3]
          %v435 = vxor.u32 %v433, 2147483648
          %v436 = vmul.f32 %v435, 1.442695
          %v437 = vpow.pop %v436
          %v438 = vadd.f32 %v437, 1.0
          %v439 = vrcp.pop %v438
          %v440 = vmul.f32 1.0, %v439
          %v441 = vmax.f32 %v433, 0.0
          %v442 = vmul.f32 %v433, %v434
          %v443 = vsub.f32 %v441, %v442
          %v444 = vsub.f32 1.0, %v440
          %v445 = vmax.f32 %v440, %v444
          %v446 = vlog2.pop %v445
          %v447 = vmul.f32 %v446, 0.6931472
          %v448 = vsub.f32 %v443, %v447
          %vm449 = vcmp.eq.s32.totalorder %v423, 3
          %vm450 = vcmask 25600
          %v451 = vsel %vm450, %v448, 0.0
          %452 = vadd.xlane.f32.xlu0 %v451
          %v453 = vpop.xlane.xlu0 %452
          %v454 = vrot.slane %v453, 4
          %v455 = vadd.f32 %v453, %v454
          %v456 = vrot.slane %v455, 2
          %v457 = vadd.f32 %v455, %v456
          %v458 = vrot.slane %v457, 1
          %v459 = vadd.f32 %v457, %v458
          %s460 = vtos %v459
          %v461 = vstv %s460
          %v462 = vsel %vm449, %v461, %v432
          %463 = vst [vmem:[%s293] sm:$0x1] %v462
        $region56: #{tpu_custom_call.1} parent=35 // pred_fallthru
          _
        %s464 = sand.u32 %s163, 1
        %s465 = scalar_lea.sflag [#allocation7], %s464
        %s466 = sand.u32 %s163, 1
        %s467 = scalar_lea.vmem [#allocation10], %s466
        // Predicated region
        $region57: #{tpu_custom_call.1} parent=35 // pred_check
          %p468 = pneg %p173
        $region58: #{tpu_custom_call.1} parent=35 // pred_check_branch
          %470 = sbr.rel (%p468) target = $region60
        $region59: #{tpu_custom_call.1} parent=35 // pred_region
          %s472 = ssub.s32 16, 16
          %473 = vsyncadd %s465, %s472
          %s474 = smul.addr %s29, 2
          %s475 = sadd.s32 %s30, %s474
          %s476 = smul.addr %s475, 16
          %s477 = scalar_lea.hbm %s4, %s476
          %s479 = sshll.u32 %s467, 4
          %s480 = int_to_ptr.vmem [resolvable:$true] %s479
          %482 = dma.vmem_to_hbm [thread:$0]  %s480, 16, %s477, %s465
        $region60: #{tpu_custom_call.1} parent=35 // pred_fallthru
          _
      $region36: #{tpu_custom_call.1} parent=5 // pred_fallthru
        _
      %p483 = scmp.le.s32.totalorder 2, %s19
      // Predicated region
      $region61: #{tpu_custom_call.1} parent=5 // pred_check
        %p484 = pneg %p483
      $region62: #{tpu_custom_call.1} parent=5 // pred_check_branch
        %486 = sbr.rel (%p484) target = $region64
      $region63: #{tpu_custom_call.1} parent=5 // pred_region
        %s487 = ssub.s32 %s19, 2
        // Predicated region
        $region65: #{tpu_custom_call.1} parent=63 // pred_check
          %p488 = pneg %p179
        $region66: #{tpu_custom_call.1} parent=63 // pred_check_branch
          %490 = sbr.rel (%p488) target = $region68
        $region67: #{tpu_custom_call.1} parent=63 // pred_region
          %s491 = sand.u32 %s164, 1
          %s492 = scalar_lea.sflag [#allocation7], %s491
          %s493 = sand.u32 %s164, 1
          %s494 = scalar_lea.vmem [#allocation10], %s493
          %495 = dma.done %s492, 16
        $region68: #{tpu_custom_call.1} parent=63 // pred_fallthru
          _
      $region64: #{tpu_custom_call.1} parent=5 // pred_fallthru
        _
    $region6: #{tpu_custom_call.1} parent=1 // loop_footer
      %s23 = sadd.s32 1, %s19
    $region7: #{tpu_custom_call.1} parent=1 // loop_footer_branch
      %18 = sbr.rel target = $region3
    $region8: #{tpu_custom_call.1} parent=1 // loop_exit
      _
    %496 = vsyncpa [#allocation6], 1
    %s497 = scalar_lea.sflag [#allocation6], 1
    %498 = vsyncpa %s497, 1
    %499 = vsyncpa [#allocation9], 1
    %s500 = scalar_lea.sflag [#allocation9], 1
    %501 = vsyncpa %s500, 1
    %502 = vsyncpa [#allocation7], 1
    %s503 = scalar_lea.sflag [#allocation7], 1
    %504 = vsyncpa %s503, 1

</llo_original>
